<compile_context>
chip_gen: v5e
topology: v5e:2x2
jax: 0.10.0
libtpu: 0.0.40
codegen_flags: <defaults>
</compile_context>

<pallas_src>
import jax
import jax.numpy as jnp
import numpy as np
from jax.experimental import pallas as pl
from jax.experimental.pallas import tpu as pltpu


_VMEM = pl.BlockSpec(memory_space=pltpu.MemorySpace.VMEM)


def _round_up(x, m):
    return (x + m - 1) // m * m


# ---------------------------------------------------------------------------
# Fused Pallas kernel: n_layers LSTM cells (seq_len == 1) + output linear
# ---------------------------------------------------------------------------
def _make_decoder_kernel(n_layers, hid_dim):
    H = hid_dim

    def kernel(*refs):
        # inputs
        x_ref, h_ref, c_ref = refs[0], refs[1], refs[2]
        wb = refs[3:3 + 2 * n_layers]                # (w_0, b_0, w_1, b_1, ...)
        w_fc_ref = refs[3 + 2 * n_layers]
        b_fc_ref = refs[4 + 2 * n_layers]
        # outputs
        pred_ref, h_out_ref, c_out_ref = refs[5 + 2 * n_layers:]

        x = x_ref[...]                               # (Bp, E) bf16
        # n_layers is small & static -> unroll in Python (static slices only).
        for l in range(n_layers):
            w_ref, b_ref = wb[2 * l], wb[2 * l + 1]
            h = h_ref[l]                             # (Bp, H)  f32
            c = c_ref[l]                             # (Bp, H)  f32

            # merged gate matmul: [x, h] @ [W_ih^T ; W_hh^T]  -> (Bp, 4H) f32
            xh = jnp.concatenate([x, h.astype(x.dtype)], axis=-1)
            gates = (jnp.dot(xh, w_ref[...],
                             preferred_element_type=jnp.float32)
                     + b_ref[...])

            # lane-aligned when H % 128 == 0 (true for the test shapes)
            i_g = jax.nn.sigmoid(gates[:, 0 * H:1 * H])
            f_g = jax.nn.sigmoid(gates[:, 1 * H:2 * H])
            g_g = jnp.tanh(gates[:, 2 * H:3 * H])
            o_g = jax.nn.sigmoid(gates[:, 3 * H:4 * H])

            c_new = f_g * c + i_g * g_g              # f32 elementwise
            h_new = o_g * jnp.tanh(c_new)

            h_out_ref[l] = h_new.astype(h_out_ref.dtype)
            c_out_ref[l] = c_new.astype(c_out_ref.dtype)
            x = h_new.astype(x.dtype)                # bf16 input to next layer

        # output projection (lane-dense store when V % 128 == 0)
        pred_ref[...] = (jnp.dot(x, w_fc_ref[...],
                                 preferred_element_type=jnp.float32)
                         + b_fc_ref[...]).astype(pred_ref.dtype)

    return kernel


# ---------------------------------------------------------------------------
# Decoder forward: glue (embedding gather, batch padding) + one pallas_call
# ---------------------------------------------------------------------------
@jax.jit
def decoder_forward(params, tokens, hidden, cell):
    """Replicates Decoder.forward(input, hidden, cell).

    tokens: (B,) int32
    hidden, cell: (n_layers, B, hid_dim) float32
    returns: prediction (B, output_dim) f32, hidden, cell (n_layers, B, hid_dim) f32
    """
    n_layers, B, H = hidden.shape
    V = params["w_fc"].shape[1]

    # Embedding lookup (gather) stays in plain JAX glue; table is bf16 so the
    # activation fed to the first matmul is already an MXU operand dtype.
    x = jnp.take(params["embedding"], tokens, axis=0)        # (B, E) bf16

    # Pad batch up to a sublane multiple (8) so vregs/MXU rows are filled.
    Bp = max(8, _round_up(B, 8))
    if Bp != B:
        x = jnp.pad(x, ((0, Bp - B), (0, 0)))
        hidden_p = jnp.pad(hidden, ((0, 0), (0, Bp - B), (0, 0)))
        cell_p = jnp.pad(cell, ((0, 0), (0, Bp - B), (0, 0)))
    else:
        hidden_p, cell_p = hidden, cell

    wb = []
    for l in range(n_layers):
        wb += [params["w"][l], params["b"][l]]

    n_in = 3 + 2 * n_layers + 2
    pred, h_out, c_out = pl.pallas_call(
        _make_decoder_kernel(n_layers, H),
        out_shape=(jax.ShapeDtypeStruct((Bp, V), jnp.float32),
                   jax.ShapeDtypeStruct((n_layers, Bp, H), jnp.float32),
                   jax.ShapeDtypeStruct((n_layers, Bp, H), jnp.float32)),
        in_specs=[_VMEM] * n_in,
        out_specs=(_VMEM, _VMEM, _VMEM),
        # hidden -> h_out, cell -> c_out updated in place (no extra HBM alloc)
        input_output_aliases={1: 1, 2: 2},
    )(x, hidden_p, cell_p, *wb, params["w_fc"], params["b_fc"])

    if Bp != B:
        pred = pred[:B]
        h_out = h_out[:, :B]
        c_out = c_out[:, :B]
    return pred, h_out, c_out


# ---------------------------------------------------------------------------
# Deterministic parameter init (shapes implied by the nn.Module)
# ---------------------------------------------------------------------------
def init_params(key, output_dim, emb_dim, hid_dim, n_layers,
                mxu_dtype=jnp.bfloat16):
    ks = jax.random.split(key, 3 + 3 * n_layers)
    scale = 1.0 / np.sqrt(hid_dim)

    params = {
        "embedding": jax.random.normal(
            ks[0], (output_dim, emb_dim), jnp.float32).astype(mxu_dtype),
        # fc_out: PyTorch Linear weight is (output_dim, hid_dim); store transposed.
        "w_fc": jax.random.uniform(
            ks[1], (hid_dim, output_dim), jnp.float32,
            -scale, scale).astype(mxu_dtype),
        "b_fc": jax.random.uniform(ks[2], (1, output_dim), jnp.float32,
                                   -scale, scale),
        "w": [], "b": [],
    }
    for l in range(n_layers):
        d_in = emb_dim if l == 0 else hid_dim
        k_w, k_bi, k_bh = ks[3 + 3 * l: 6 + 3 * l]
        # Combined [W_ih^T ; W_hh^T]: (d_in + H, 4H), PyTorch gate order [i,f,g,o].
        w = jax.random.uniform(k_w, (d_in + hid_dim, 4 * hid_dim), jnp.float32,
                               -scale, scale)
        params["w"].append(w.astype(mxu_dtype))
        b_ih = jax.random.uniform(k_bi, (4 * hid_dim,), jnp.float32,
                                  -scale, scale)
        b_hh = jax.random.uniform(k_bh, (4 * hid_dim,), jnp.float32,
                                  -scale, scale)
        params["b"].append((b_ih + b_hh).reshape(1, 4 * hid_dim))
    return params


# ---------------------------------------------------------------------------
# Pure-JAX reference (mirrors the kernel's bf16 operand casts, f32 math)
# ---------------------------------------------------------------------------
def decoder_forward_ref(params, tokens, hidden, cell):
    f32 = jnp.float32
    mxu_dtype = params["embedding"].dtype
    x = params["embedding"].astype(f32)[tokens]
    n_layers, _, H = hidden.shape
    new_h, new_c = [], []
    for l in range(n_layers):
        h = hidden[l].astype(mxu_dtype).astype(f32)
        xh = jnp.concatenate([x, h], axis=-1)
        gates = xh @ params["w"][l].astype(f32) + params["b"][l]
        i = jax.nn.sigmoid(gates[:, :H])
        f = jax.nn.sigmoid(gates[:, H:2 * H])
        g = jnp.tanh(gates[:, 2 * H:3 * H])
        o = jax.nn.sigmoid(gates[:, 3 * H:])
        c_new = f * cell[l] + i * g
        h_new = o * jnp.tanh(c_new)
        new_h.append(h_new)
        new_c.append(c_new)
        x = h_new.astype(mxu_dtype).astype(f32)
    pred = x @ params["w_fc"].astype(f32) + params["b_fc"]
    return pred, jnp.stack(new_h), jnp.stack(new_c)


if __name__ == "__main__":
    OUTPUT_DIM = 256   # vocab size  (multiple of 128 -> lane-dense logit store)
    EMB_DIM = 128
    HID_DIM = 128      # multiple of 128 -> lane-aligned gate slices
    N_LAYERS = 2
    BATCH = 8          # full sublane occupancy

    key = jax.random.PRNGKey(0)
    k_param, k_tok, k_h, k_c = jax.random.split(key, 4)

    params = init_params(k_param, OUTPUT_DIM, EMB_DIM, HID_DIM, N_LAYERS)
    tokens = jax.random.randint(k_tok, (BATCH,), 0, OUTPUT_DIM, jnp.int32)
    hidden = jax.random.normal(k_h, (N_LAYERS, BATCH, HID_DIM), jnp.float32)
    cell = jax.random.normal(k_c, (N_LAYERS, BATCH, HID_DIM), jnp.float32)

    # Reference first (Pallas path aliases hidden/cell into its outputs).
    pred_r, h_r, c_r = decoder_forward_ref(params, tokens, hidden, cell)

    pred, h_out, c_out = decoder_forward(params, tokens, hidden, cell)
    jax.block_until_ready((pred, h_out, c_out))

    assert pred.shape == (BATCH, OUTPUT_DIM)
    assert h_out.shape == (N_LAYERS, BATCH, HID_DIM)
    assert c_out.shape == (N_LAYERS, BATCH, HID_DIM)

    np.testing.assert_allclose(np.asarray(pred), np.asarray(pred_r),
                               atol=1e-3, rtol=1e-3)
    np.testing.assert_allclose(np.asarray(h_out), np.asarray(h_r),
                               atol=1e-3, rtol=1e-3)
    np.testing.assert_allclose(np.asarray(c_out), np.asarray(c_r),
                               atol=1e-3, rtol=1e-3)

    print("KERNEL_OK")
</pallas_src>

<mosaic_0001>
module attributes {stable_mosaic.version = 11 : i64} {
  func.func @kernel(%arg0: memref<8x128xbf16, #tpu.memory_space<vmem>>, %arg1: memref<2x8x128xf32, #tpu.memory_space<vmem>>, %arg2: memref<2x8x128xf32, #tpu.memory_space<vmem>>, %arg3: memref<256x512xbf16, #tpu.memory_space<vmem>>, %arg4: memref<1x512xf32, #tpu.memory_space<vmem>>, %arg5: memref<256x512xbf16, #tpu.memory_space<vmem>>, %arg6: memref<1x512xf32, #tpu.memory_space<vmem>>, %arg7: memref<128x256xbf16, #tpu.memory_space<vmem>>, %arg8: memref<1x256xf32, #tpu.memory_space<vmem>>, %arg9: memref<8x256xf32, #tpu.memory_space<vmem>>, %arg10: memref<2x8x128xf32, #tpu.memory_space<vmem>>, %arg11: memref<2x8x128xf32, #tpu.memory_space<vmem>>) attributes {dimension_semantics = [], scalar_prefetch = 0 : i64, scratch_operands = 0 : i64, tpu.core_type = #tpu.core_type<tc>} {
    %c0 = arith.constant 0 : index
    %c0_0 = arith.constant 0 : index
    %0 = vector.load %arg0[%c0, %c0_0] : memref<8x128xbf16, #tpu.memory_space<vmem>>, vector<8x128xbf16>
    %c0_1 = arith.constant 0 : index
    %c0_2 = arith.constant 0 : index
    %c0_3 = arith.constant 0 : index
    %1 = vector.load %arg1[%c0_1, %c0_2, %c0_3] : memref<2x8x128xf32, #tpu.memory_space<vmem>>, vector<1x8x128xf32>
    %2 = vector.shape_cast %1 : vector<1x8x128xf32> to vector<8x128xf32>
    %c0_4 = arith.constant 0 : index
    %c0_5 = arith.constant 0 : index
    %c0_6 = arith.constant 0 : index
    %3 = vector.load %arg2[%c0_4, %c0_5, %c0_6] : memref<2x8x128xf32, #tpu.memory_space<vmem>>, vector<1x8x128xf32>
    %4 = vector.shape_cast %3 : vector<1x8x128xf32> to vector<8x128xf32>
    %5 = arith.truncf %2 : vector<8x128xf32> to vector<8x128xbf16>
    %6 = tpu.concatenate %0, %5 in 1 : vector<8x128xbf16>, vector<8x128xbf16> -> vector<8x256xbf16>
    %c0_7 = arith.constant 0 : index
    %c0_8 = arith.constant 0 : index
    %7 = vector.load %arg3[%c0_7, %c0_8] : memref<256x512xbf16, #tpu.memory_space<vmem>>, vector<256x512xbf16>
    %cst = arith.constant dense<0.000000e+00> : vector<8x512xf32>
    %8 = tpu.matmul %6, %7, %cst {dimension_numbers = #tpu.dot_dimension_numbers<[1], [0], [0], [1], [0, 0, 1, 1], [], []>} : vector<8x256xbf16>, vector<256x512xbf16>, vector<8x512xf32> -> vector<8x512xf32>
    %c0_9 = arith.constant 0 : index
    %c0_10 = arith.constant 0 : index
    %9 = vector.load %arg4[%c0_9, %c0_10] : memref<1x512xf32, #tpu.memory_space<vmem>>, vector<1x512xf32>
    %10 = vector.broadcast %9 : vector<1x512xf32> to vector<8x512xf32>
    %11 = arith.addf %8, %10 : vector<8x512xf32>
    %12 = vector.extract_strided_slice %11 {offsets = [0, 0], sizes = [8, 128], strides = [1, 1]} : vector<8x512xf32> to vector<8x128xf32>
    %13 = arith.negf %12 : vector<8x128xf32>
    %14 = math.exp %13 : vector<8x128xf32>
    %cst_11 = arith.constant 1.000000e+00 : f32
    %15 = vector.broadcast %cst_11 : f32 to vector<8x128xf32>
    %16 = arith.addf %15, %14 : vector<8x128xf32>
    %17 = arith.divf %15, %16 : vector<8x128xf32>
    %18 = vector.extract_strided_slice %11 {offsets = [0, 128], sizes = [8, 128], strides = [1, 1]} : vector<8x512xf32> to vector<8x128xf32>
    %19 = arith.negf %18 : vector<8x128xf32>
    %20 = math.exp %19 : vector<8x128xf32>
    %cst_12 = arith.constant 1.000000e+00 : f32
    %21 = vector.broadcast %cst_12 : f32 to vector<8x128xf32>
    %22 = arith.addf %21, %20 : vector<8x128xf32>
    %23 = arith.divf %21, %22 : vector<8x128xf32>
    %24 = vector.extract_strided_slice %11 {offsets = [0, 256], sizes = [8, 128], strides = [1, 1]} : vector<8x512xf32> to vector<8x128xf32>
    %25 = math.tanh %24 : vector<8x128xf32>
    %26 = vector.extract_strided_slice %11 {offsets = [0, 384], sizes = [8, 128], strides = [1, 1]} : vector<8x512xf32> to vector<8x128xf32>
    %27 = arith.negf %26 : vector<8x128xf32>
    %28 = math.exp %27 : vector<8x128xf32>
    %cst_13 = arith.constant 1.000000e+00 : f32
    %29 = vector.broadcast %cst_13 : f32 to vector<8x128xf32>
    %30 = arith.addf %29, %28 : vector<8x128xf32>
    %31 = arith.divf %29, %30 : vector<8x128xf32>
    %32 = arith.mulf %23, %4 : vector<8x128xf32>
    %33 = arith.mulf %17, %25 : vector<8x128xf32>
    %34 = arith.addf %32, %33 : vector<8x128xf32>
    %35 = math.tanh %34 : vector<8x128xf32>
    %36 = arith.mulf %31, %35 : vector<8x128xf32>
    %c0_14 = arith.constant 0 : index
    %c0_15 = arith.constant 0 : index
    %c0_16 = arith.constant 0 : index
    %37 = vector.load %arg10[%c0_14, %c0_15, %c0_16] : memref<2x8x128xf32, #tpu.memory_space<vmem>>, vector<1x8x128xf32>
    %38 = vector.shape_cast %37 : vector<1x8x128xf32> to vector<8x128xf32>
    %39 = vector.shape_cast %36 : vector<8x128xf32> to vector<1x8x128xf32>
    tpu.vector_store %arg10[%c0_14, %c0_15, %c0_16], %39 {strides = array<i32>} : memref<2x8x128xf32, #tpu.memory_space<vmem>>, vector<1x8x128xf32>,
    %c0_17 = arith.constant 0 : index
    %c0_18 = arith.constant 0 : index
    %c0_19 = arith.constant 0 : index
    %40 = vector.load %arg11[%c0_17, %c0_18, %c0_19] : memref<2x8x128xf32, #tpu.memory_space<vmem>>, vector<1x8x128xf32>
    %41 = vector.shape_cast %40 : vector<1x8x128xf32> to vector<8x128xf32>
    %42 = vector.shape_cast %34 : vector<8x128xf32> to vector<1x8x128xf32>
    tpu.vector_store %arg11[%c0_17, %c0_18, %c0_19], %42 {strides = array<i32>} : memref<2x8x128xf32, #tpu.memory_space<vmem>>, vector<1x8x128xf32>,
    %43 = arith.truncf %36 : vector<8x128xf32> to vector<8x128xbf16>
    %c1 = arith.constant 1 : index
    %c0_20 = arith.constant 0 : index
    %c0_21 = arith.constant 0 : index
    %44 = vector.load %arg1[%c1, %c0_20, %c0_21] : memref<2x8x128xf32, #tpu.memory_space<vmem>>, vector<1x8x128xf32>
    %45 = vector.shape_cast %44 : vector<1x8x128xf32> to vector<8x128xf32>
    %c1_22 = arith.constant 1 : index
    %c0_23 = arith.constant 0 : index
    %c0_24 = arith.constant 0 : index
    %46 = vector.load %arg2[%c1_22, %c0_23, %c0_24] : memref<2x8x128xf32, #tpu.memory_space<vmem>>, vector<1x8x128xf32>
    %47 = vector.shape_cast %46 : vector<1x8x128xf32> to vector<8x128xf32>
    %48 = arith.truncf %45 : vector<8x128xf32> to vector<8x128xbf16>
    %49 = tpu.concatenate %43, %48 in 1 : vector<8x128xbf16>, vector<8x128xbf16> -> vector<8x256xbf16>
    %c0_25 = arith.constant 0 : index
    %c0_26 = arith.constant 0 : index
    %50 = vector.load %arg5[%c0_25, %c0_26] : memref<256x512xbf16, #tpu.memory_space<vmem>>, vector<256x512xbf16>
    %cst_27 = arith.constant dense<0.000000e+00> : vector<8x512xf32>
    %51 = tpu.matmul %49, %50, %cst_27 {dimension_numbers = #tpu.dot_dimension_numbers<[1], [0], [0], [1], [0, 0, 1, 1], [], []>} : vector<8x256xbf16>, vector<256x512xbf16>, vector<8x512xf32> -> vector<8x512xf32>
    %c0_28 = arith.constant 0 : index
    %c0_29 = arith.constant 0 : index
    %52 = vector.load %arg6[%c0_28, %c0_29] : memref<1x512xf32, #tpu.memory_space<vmem>>, vector<1x512xf32>
    %53 = vector.broadcast %52 : vector<1x512xf32> to vector<8x512xf32>
    %54 = arith.addf %51, %53 : vector<8x512xf32>
    %55 = vector.extract_strided_slice %54 {offsets = [0, 0], sizes = [8, 128], strides = [1, 1]} : vector<8x512xf32> to vector<8x128xf32>
    %56 = arith.negf %55 : vector<8x128xf32>
    %57 = math.exp %56 : vector<8x128xf32>
    %cst_30 = arith.constant 1.000000e+00 : f32
    %58 = vector.broadcast %cst_30 : f32 to vector<8x128xf32>
    %59 = arith.addf %58, %57 : vector<8x128xf32>
    %60 = arith.divf %58, %59 : vector<8x128xf32>
    %61 = vector.extract_strided_slice %54 {offsets = [0, 128], sizes = [8, 128], strides = [1, 1]} : vector<8x512xf32> to vector<8x128xf32>
    %62 = arith.negf %61 : vector<8x128xf32>
    %63 = math.exp %62 : vector<8x128xf32>
    %cst_31 = arith.constant 1.000000e+00 : f32
    %64 = vector.broadcast %cst_31 : f32 to vector<8x128xf32>
    %65 = arith.addf %64, %63 : vector<8x128xf32>
    %66 = arith.divf %64, %65 : vector<8x128xf32>
    %67 = vector.extract_strided_slice %54 {offsets = [0, 256], sizes = [8, 128], strides = [1, 1]} : vector<8x512xf32> to vector<8x128xf32>
    %68 = math.tanh %67 : vector<8x128xf32>
    %69 = vector.extract_strided_slice %54 {offsets = [0, 384], sizes = [8, 128], strides = [1, 1]} : vector<8x512xf32> to vector<8x128xf32>
    %70 = arith.negf %69 : vector<8x128xf32>
    %71 = math.exp %70 : vector<8x128xf32>
    %cst_32 = arith.constant 1.000000e+00 : f32
    %72 = vector.broadcast %cst_32 : f32 to vector<8x128xf32>
    %73 = arith.addf %72, %71 : vector<8x128xf32>
    %74 = arith.divf %72, %73 : vector<8x128xf32>
    %75 = arith.mulf %66, %47 : vector<8x128xf32>
    %76 = arith.mulf %60, %68 : vector<8x128xf32>
    %77 = arith.addf %75, %76 : vector<8x128xf32>
    %78 = math.tanh %77 : vector<8x128xf32>
    %79 = arith.mulf %74, %78 : vector<8x128xf32>
    %c1_33 = arith.constant 1 : index
    %c0_34 = arith.constant 0 : index
    %c0_35 = arith.constant 0 : index
    %80 = vector.load %arg10[%c1_33, %c0_34, %c0_35] : memref<2x8x128xf32, #tpu.memory_space<vmem>>, vector<1x8x128xf32>
    %81 = vector.shape_cast %80 : vector<1x8x128xf32> to vector<8x128xf32>
    %82 = vector.shape_cast %79 : vector<8x128xf32> to vector<1x8x128xf32>
    tpu.vector_store %arg10[%c1_33, %c0_34, %c0_35], %82 {strides = array<i32>} : memref<2x8x128xf32, #tpu.memory_space<vmem>>, vector<1x8x128xf32>,
    %c1_36 = arith.constant 1 : index
    %c0_37 = arith.constant 0 : index
    %c0_38 = arith.constant 0 : index
    %83 = vector.load %arg11[%c1_36, %c0_37, %c0_38] : memref<2x8x128xf32, #tpu.memory_space<vmem>>, vector<1x8x128xf32>
    %84 = vector.shape_cast %83 : vector<1x8x128xf32> to vector<8x128xf32>
    %85 = vector.shape_cast %77 : vector<8x128xf32> to vector<1x8x128xf32>
    tpu.vector_store %arg11[%c1_36, %c0_37, %c0_38], %85 {strides = array<i32>} : memref<2x8x128xf32, #tpu.memory_space<vmem>>, vector<1x8x128xf32>,
    %86 = arith.truncf %79 : vector<8x128xf32> to vector<8x128xbf16>
    %c0_39 = arith.constant 0 : index
    %c0_40 = arith.constant 0 : index
    %87 = vector.load %arg7[%c0_39, %c0_40] : memref<128x256xbf16, #tpu.memory_space<vmem>>, vector<128x256xbf16>
    %cst_41 = arith.constant dense<0.000000e+00> : vector<8x256xf32>
    %88 = tpu.matmul %86, %87, %cst_41 {dimension_numbers = #tpu.dot_dimension_numbers<[1], [0], [0], [1], [0, 0, 1, 1], [], []>} : vector<8x128xbf16>, vector<128x256xbf16>, vector<8x256xf32> -> vector<8x256xf32>
    %c0_42 = arith.constant 0 : index
    %c0_43 = arith.constant 0 : index
    %89 = vector.load %arg8[%c0_42, %c0_43] : memref<1x256xf32, #tpu.memory_space<vmem>>, vector<1x256xf32>
    %90 = vector.broadcast %89 : vector<1x256xf32> to vector<8x256xf32>
    %91 = arith.addf %88, %90 : vector<8x256xf32>
    %c0_44 = arith.constant 0 : index
    %c0_45 = arith.constant 0 : index
    %92 = vector.load %arg9[%c0_44, %c0_45] : memref<8x256xf32, #tpu.memory_space<vmem>>, vector<8x256xf32>
    tpu.vector_store %arg9[%c0_44, %c0_45], %91 {strides = array<i32>} : memref<8x256xf32, #tpu.memory_space<vmem>>, vector<8x256xf32>,
    return
  }
}

</mosaic_0001>

<llo_original>
// kernel: decoder_forward.1
$region0: #{decoder_forward.1}
  #allocation0 [shape = 'u32[]', space=smem, size = 0x4, offset = 0x4, fixed_abs, tag = 'smem constant byte address 0x4 - core index']
  #allocation1 [shape = 'u32[72,128]{1,0:T(1,128)}', space=vmem, size = 0x9000, scoped, tag = 'internal scratch']
  %s0 = inlined_call_operand.vmem [shape: bf16[8,128], index: 0, kind: input, shape index: {}]
  %s1 = inlined_call_operand.hbm [shape: f32[2,8,128], index: 1, kind: input, shape index: {}, may-alias: {1,10}]
  %s2 = inlined_call_operand.hbm [shape: f32[2,8,128], index: 2, kind: input, shape index: {}, may-alias: {2,11}]
  %s3 = inlined_call_operand.hbm [shape: bf16[256,512], index: 3, kind: input, shape index: {}]
  %s4 = inlined_call_operand.vmem [shape: f32[1,512], index: 4, kind: input, shape index: {}]
  %s5 = inlined_call_operand.hbm [shape: bf16[256,512], index: 5, kind: input, shape index: {}]
  %s6 = inlined_call_operand.vmem [shape: f32[1,512], index: 6, kind: input, shape index: {}]
  %s7 = inlined_call_operand.hbm [shape: bf16[128,256], index: 7, kind: input, shape index: {}]
  %s8 = inlined_call_operand.vmem [shape: f32[1,256], index: 8, kind: input, shape index: {}]
  %s9 = inlined_call_operand.hbm [shape: f32[8,256], index: 9, kind: output, shape index: {0}]
  %s10 = inlined_call_operand.hbm [shape: f32[2,8,128], index: 10, kind: output, shape index: {1}, may-alias: {1,10}]
  %s11 = inlined_call_operand.hbm [shape: f32[2,8,128], index: 11, kind: output, shape index: {2}, may-alias: {2,11}]
  %12 = xla_tuple %s9, %s10, %s11
  %s13 = sld [smem:[#allocation0]]
  $region82: #{decoder_forward.1} parent=0
    _
  %s15 = ssub.s32 1, %s13
  %s16 = scalar_select 0, %s15, %s13
  $region1: #{decoder_forward.1} parent=0
    #allocation2 [shape = 'u8[8192]{0}', space=vmem, size = 0x2000, scoped, tag = 'input window, operand 1, single buffered']
    #allocation3 [shape = 's32[1]{0}', space=sflag, size = 0x4, scoped, tag = 'scoped memory for decoder_forward.1']
    #allocation4 [shape = 's32[1]{0}', space=sflag, size = 0x4, scoped, tag = 'scoped memory for decoder_forward.1']
    #allocation5 [shape = 'u8[8192]{0}', space=vmem, size = 0x2000, scoped, tag = 'input window, operand 2, single buffered']
    #allocation6 [shape = 's32[1]{0}', space=sflag, size = 0x4, scoped, tag = 'scoped memory for decoder_forward.1']
    #allocation7 [shape = 'u8[262144]{0}', space=vmem, size = 0x40000, scoped, tag = 'input window, operand 3, single buffered']
    #allocation8 [shape = 'u8[262144]{0}', space=vmem, size = 0x40000, scoped, tag = 'input window, operand 5, single buffered']
    #allocation9 [shape = 's32[1]{0}', space=sflag, size = 0x4, scoped, tag = 'scoped memory for decoder_forward.1']
    #allocation10 [shape = 'u8[65536]{0}', space=vmem, size = 0x10000, scoped, tag = 'input window, operand 7, single buffered']
    #allocation11 [shape = 'u8[8192]{0}', space=vmem, size = 0x2000, scoped, tag = 'output window, operand 0, single buffered']
    #allocation12 [shape = 'u8[8192]{0}', space=vmem, size = 0x2000, scoped, tag = 'output window, operand 1, single buffered']
    #allocation13 [shape = 's32[1]{0}', space=sflag, size = 0x4, scoped, tag = 'scoped memory for decoder_forward.1']
    #allocation14 [shape = 'u8[8192]{0}', space=vmem, size = 0x2000, scoped, tag = 'output window, operand 2, single buffered']
    %17 = vsyncpa [#allocation3], 0
    %18 = vsyncpa [#allocation6], 0
    %19 = vsyncpa [#allocation9], 0
    %20 = vsyncpa [#allocation4], 0
    %21 = vsyncpa [#allocation13], 0
    // Predicated region
    $region2: #{decoder_forward.1} parent=1 // pred_check
      _
    $region3: #{decoder_forward.1} parent=1 // pred_check_branch
      %23 = sbr.rel (0) target = $region5
    $region4: #{decoder_forward.1} parent=1 // pred_region
      _
    $region5: #{decoder_forward.1} parent=1 // pred_fallthru
      _
    // Predicated region
    $region6: #{decoder_forward.1} parent=1 // pred_check
      _
    $region7: #{decoder_forward.1} parent=1 // pred_check_branch
      %25 = sbr.rel (0) target = $region9
    $region8: #{decoder_forward.1} parent=1 // pred_region
      %27 = vsyncadd [#allocation3], 0
      %s28 = sshll.u32 %s1, 4
      %s29 = int_to_ptr.hbm [resolvable:$true] %s28
      %s30 = sshll.u32 [#allocation2], 4
      %s31 = int_to_ptr.vmem [resolvable:$true] %s30
      %36 = dma.hbm_to_vmem [thread:$0]  %s29, 256, %s31, [#allocation3], 128, 128, 8
    $region9: #{decoder_forward.1} parent=1 // pred_fallthru
      _
    // Predicated region
    $region10: #{decoder_forward.1} parent=1 // pred_check
      _
    $region11: #{decoder_forward.1} parent=1 // pred_check_branch
      %38 = sbr.rel (0) target = $region13
    $region12: #{decoder_forward.1} parent=1 // pred_region
      %40 = vsyncadd [#allocation6], 0
      %s41 = sshll.u32 %s2, 4
      %s42 = int_to_ptr.hbm [resolvable:$true] %s41
      %s43 = sshll.u32 [#allocation5], 4
      %s44 = int_to_ptr.vmem [resolvable:$true] %s43
      %49 = dma.hbm_to_vmem [thread:$0]  %s42, 256, %s44, [#allocation6], 128, 128, 8
    $region13: #{decoder_forward.1} parent=1 // pred_fallthru
      _
    // Predicated region
    $region14: #{decoder_forward.1} parent=1 // pred_check
      _
    $region15: #{decoder_forward.1} parent=1 // pred_check_branch
      %51 = sbr.rel (0) target = $region17
    $region16: #{decoder_forward.1} parent=1 // pred_region
      %53 = vsyncadd [#allocation6], 0
      %s54 = sshll.u32 %s3, 4
      %s55 = int_to_ptr.hbm [resolvable:$true] %s54
      %s56 = sshll.u32 [#allocation7], 4
      %s57 = int_to_ptr.vmem [resolvable:$true] %s56
      %62 = dma.hbm_to_vmem [thread:$0]  %s55, 8192, %s57, [#allocation6], 256, 256, 16
    $region17: #{decoder_forward.1} parent=1 // pred_fallthru
      _
    // Predicated region
    $region18: #{decoder_forward.1} parent=1 // pred_check
      _
    $region19: #{decoder_forward.1} parent=1 // pred_check_branch
      %64 = sbr.rel (0) target = $region21
    $region20: #{decoder_forward.1} parent=1 // pred_region
      _
    $region21: #{decoder_forward.1} parent=1 // pred_fallthru
      _
    // Predicated region
    $region22: #{decoder_forward.1} parent=1 // pred_check
      _
    $region23: #{decoder_forward.1} parent=1 // pred_check_branch
      %66 = sbr.rel (0) target = $region25
    $region24: #{decoder_forward.1} parent=1 // pred_region
      %68 = vsyncadd [#allocation9], 0
      %s69 = sshll.u32 %s5, 4
      %s70 = int_to_ptr.hbm [resolvable:$true] %s69
      %s71 = sshll.u32 [#allocation8], 4
      %s72 = int_to_ptr.vmem [resolvable:$true] %s71
      %77 = dma.hbm_to_vmem [thread:$0]  %s70, 8192, %s72, [#allocation9], 256, 256, 16
    $region25: #{decoder_forward.1} parent=1 // pred_fallthru
      _
    // Predicated region
    $region26: #{decoder_forward.1} parent=1 // pred_check
      _
    $region27: #{decoder_forward.1} parent=1 // pred_check_branch
      %79 = sbr.rel (0) target = $region29
    $region28: #{decoder_forward.1} parent=1 // pred_region
      _
    $region29: #{decoder_forward.1} parent=1 // pred_fallthru
      _
    // Predicated region
    $region30: #{decoder_forward.1} parent=1 // pred_check
      _
    $region31: #{decoder_forward.1} parent=1 // pred_check_branch
      %81 = sbr.rel (0) target = $region33
    $region32: #{decoder_forward.1} parent=1 // pred_region
      %83 = vsyncadd [#allocation9], 0
      %s84 = sshll.u32 %s7, 4
      %s85 = int_to_ptr.hbm [resolvable:$true] %s84
      %s86 = sshll.u32 [#allocation10], 4
      %s87 = int_to_ptr.vmem [resolvable:$true] %s86
      %92 = dma.hbm_to_vmem [thread:$0]  %s85, 2048, %s87, [#allocation9], 128, 128, 8
    $region33: #{decoder_forward.1} parent=1 // pred_fallthru
      _
    // Predicated region
    $region34: #{decoder_forward.1} parent=1 // pred_check
      _
    $region35: #{decoder_forward.1} parent=1 // pred_check_branch
      %94 = sbr.rel (0) target = $region37
    $region36: #{decoder_forward.1} parent=1 // pred_region
      _
    $region37: #{decoder_forward.1} parent=1 // pred_fallthru
      _
    // Predicated region
    $region38: #{decoder_forward.1} parent=1 // pred_check
      _
    $region39: #{decoder_forward.1} parent=1 // pred_check_branch
      %96 = sbr.rel (0) target = $region41
    $region40: #{decoder_forward.1} parent=1 // pred_region
      %98 = dma.done [#allocation3], 256
    $region41: #{decoder_forward.1} parent=1 // pred_fallthru
      _
    // Predicated region
    $region42: #{decoder_forward.1} parent=1 // pred_check
      _
    $region43: #{decoder_forward.1} parent=1 // pred_check_branch
      %100 = sbr.rel (0) target = $region45
    $region44: #{decoder_forward.1} parent=1 // pred_region
      %102 = dma.done [#allocation6], 256
    $region45: #{decoder_forward.1} parent=1 // pred_fallthru
      _
    // Predicated region
    $region46: #{decoder_forward.1} parent=1 // pred_check
      _
    $region47: #{decoder_forward.1} parent=1 // pred_check_branch
      %104 = sbr.rel (0) target = $region49
    $region48: #{decoder_forward.1} parent=1 // pred_region
      %106 = dma.done [#allocation6], 8192
    $region49: #{decoder_forward.1} parent=1 // pred_fallthru
      _
    // Predicated region
    $region50: #{decoder_forward.1} parent=1 // pred_check
      _
    $region51: #{decoder_forward.1} parent=1 // pred_check_branch
      %108 = sbr.rel (0) target = $region53
    $region52: #{decoder_forward.1} parent=1 // pred_region
      %110 = dma.done [#allocation9], 8192
    $region53: #{decoder_forward.1} parent=1 // pred_fallthru
      _
    // Predicated region
    $region54: #{decoder_forward.1} parent=1 // pred_check
      _
    $region55: #{decoder_forward.1} parent=1 // pred_check_branch
      %112 = sbr.rel (0) target = $region57
    $region56: #{decoder_forward.1} parent=1 // pred_region
      %114 = dma.done [#allocation9], 2048
    $region57: #{decoder_forward.1} parent=1 // pred_fallthru
      _
    %v115 = vld [vmem:[%s0] sm:$0xf]
    %v116 = vld [vmem:[#allocation2] sm:$0xff]
    %v117 = vld [vmem:[#allocation5] sm:$0xff]
    %v118 = vpack.c.bf16 %v116, %v116
    %v119 = vld [vmem:[#allocation7] sm:$0xff]
    %v120 = vld [vmem:[#allocation7 + $0x8] sm:$0xff]
    %v121 = vld [vmem:[#allocation7 + $0x10] sm:$0xff]
    %v122 = vld [vmem:[#allocation7 + $0x18] sm:$0xff]
    %v123 = vld [vmem:[#allocation7 + $0x20] sm:$0xff]
    %v124 = vld [vmem:[#allocation7 + $0x28] sm:$0xff]
    %v125 = vld [vmem:[#allocation7 + $0x30] sm:$0xff]
    %v126 = vld [vmem:[#allocation7 + $0x38] sm:$0xff]
    %v127 = vld [vmem:[#allocation7 + $0x40] sm:$0xff]
    %v128 = vld [vmem:[#allocation7 + $0x48] sm:$0xff]
    %v129 = vld [vmem:[#allocation7 + $0x50] sm:$0xff]
    %v130 = vld [vmem:[#allocation7 + $0x58] sm:$0xff]
    %v131 = vld [vmem:[#allocation7 + $0x60] sm:$0xff]
    %v132 = vld [vmem:[#allocation7 + $0x68] sm:$0xff]
    %v133 = vld [vmem:[#allocation7 + $0x70] sm:$0xff]
    %v134 = vld [vmem:[#allocation7 + $0x78] sm:$0xff]
    %v135 = vld [vmem:[#allocation7 + $0x80] sm:$0xff]
    %v136 = vld [vmem:[#allocation7 + $0x88] sm:$0xff]
    %v137 = vld [vmem:[#allocation7 + $0x90] sm:$0xff]
    %v138 = vld [vmem:[#allocation7 + $0x98] sm:$0xff]
    %v139 = vld [vmem:[#allocation7 + $0xa0] sm:$0xff]
    %v140 = vld [vmem:[#allocation7 + $0xa8] sm:$0xff]
    %v141 = vld [vmem:[#allocation7 + $0xb0] sm:$0xff]
    %v142 = vld [vmem:[#allocation7 + $0xb8] sm:$0xff]
    %v143 = vld [vmem:[#allocation7 + $0xc0] sm:$0xff]
    %v144 = vld [vmem:[#allocation7 + $0xc8] sm:$0xff]
    %v145 = vld [vmem:[#allocation7 + $0xd0] sm:$0xff]
    %v146 = vld [vmem:[#allocation7 + $0xd8] sm:$0xff]
    %v147 = vld [vmem:[#allocation7 + $0xe0] sm:$0xff]
    %v148 = vld [vmem:[#allocation7 + $0xe8] sm:$0xff]
    %v149 = vld [vmem:[#allocation7 + $0xf0] sm:$0xff]
    %v150 = vld [vmem:[#allocation7 + $0xf8] sm:$0xff]
    %v151 = vld [vmem:[#allocation7 + $0x100] sm:$0xff]
    %v152 = vld [vmem:[#allocation7 + $0x108] sm:$0xff]
    %v153 = vld [vmem:[#allocation7 + $0x110] sm:$0xff]
    %v154 = vld [vmem:[#allocation7 + $0x118] sm:$0xff]
    %v155 = vld [vmem:[#allocation7 + $0x120] sm:$0xff]
    %v156 = vld [vmem:[#allocation7 + $0x128] sm:$0xff]
    %v157 = vld [vmem:[#allocation7 + $0x130] sm:$0xff]
    %v158 = vld [vmem:[#allocation7 + $0x138] sm:$0xff]
    %v159 = vld [vmem:[#allocation7 + $0x140] sm:$0xff]
    %v160 = vld [vmem:[#allocation7 + $0x148] sm:$0xff]
    %v161 = vld [vmem:[#allocation7 + $0x150] sm:$0xff]
    %v162 = vld [vmem:[#allocation7 + $0x158] sm:$0xff]
    %v163 = vld [vmem:[#allocation7 + $0x160] sm:$0xff]
    %v164 = vld [vmem:[#allocation7 + $0x168] sm:$0xff]
    %v165 = vld [vmem:[#allocation7 + $0x170] sm:$0xff]
    %v166 = vld [vmem:[#allocation7 + $0x178] sm:$0xff]
    %v167 = vld [vmem:[#allocation7 + $0x180] sm:$0xff]
    %v168 = vld [vmem:[#allocation7 + $0x188] sm:$0xff]
    %v169 = vld [vmem:[#allocation7 + $0x190] sm:$0xff]
    %v170 = vld [vmem:[#allocation7 + $0x198] sm:$0xff]
    %v171 = vld [vmem:[#allocation7 + $0x1a0] sm:$0xff]
    %v172 = vld [vmem:[#allocation7 + $0x1a8] sm:$0xff]
    %v173 = vld [vmem:[#allocation7 + $0x1b0] sm:$0xff]
    %v174 = vld [vmem:[#allocation7 + $0x1b8] sm:$0xff]
    %v175 = vld [vmem:[#allocation7 + $0x1c0] sm:$0xff]
    %v176 = vld [vmem:[#allocation7 + $0x1c8] sm:$0xff]
    %v177 = vld [vmem:[#allocation7 + $0x1d0] sm:$0xff]
    %v178 = vld [vmem:[#allocation7 + $0x1d8] sm:$0xff]
    %v179 = vld [vmem:[#allocation7 + $0x1e0] sm:$0xff]
    %v180 = vld [vmem:[#allocation7 + $0x1e8] sm:$0xff]
    %v181 = vld [vmem:[#allocation7 + $0x1f0] sm:$0xff]
    %v182 = vld [vmem:[#allocation7 + $0x1f8] sm:$0xff]
    %v183 = vld [vmem:[%s4] sm:$0xf]
    %v185 = vperm.slane %v183, 0
    %v186 = vperm.slane %v183, 1
    %v187 = vperm.slane %v183, 2
    %v188 = vperm.slane %v183, 3
    %v257 = vunpack.c.l.b16 %v119
    %v258 = vunpack.c.h.b16 %v119
    %v259 = vunpack.c.l.b16 %v120
    %v260 = vunpack.c.h.b16 %v120
    %v261 = vunpack.c.l.b16 %v121
    %v262 = vunpack.c.h.b16 %v121
    %v263 = vunpack.c.l.b16 %v122
    %v264 = vunpack.c.h.b16 %v122
    %v265 = vunpack.c.l.b16 %v123
    %v266 = vunpack.c.h.b16 %v123
    %v267 = vunpack.c.l.b16 %v124
    %v268 = vunpack.c.h.b16 %v124
    %v269 = vunpack.c.l.b16 %v125
    %v270 = vunpack.c.h.b16 %v125
    %v271 = vunpack.c.l.b16 %v126
    %v272 = vunpack.c.h.b16 %v126
    %v273 = vunpack.c.l.b16 %v127
    %v274 = vunpack.c.h.b16 %v127
    %v275 = vunpack.c.l.b16 %v128
    %v276 = vunpack.c.h.b16 %v128
    %v277 = vunpack.c.l.b16 %v129
    %v278 = vunpack.c.h.b16 %v129
    %v279 = vunpack.c.l.b16 %v130
    %v280 = vunpack.c.h.b16 %v130
    %v281 = vunpack.c.l.b16 %v131
    %v282 = vunpack.c.h.b16 %v131
    %v283 = vunpack.c.l.b16 %v132
    %v284 = vunpack.c.h.b16 %v132
    %v285 = vunpack.c.l.b16 %v133
    %v286 = vunpack.c.h.b16 %v133
    %v287 = vunpack.c.l.b16 %v134
    %v288 = vunpack.c.h.b16 %v134
    %v289 = vunpack.c.l.b16 %v135
    %v290 = vunpack.c.h.b16 %v135
    %v291 = vunpack.c.l.b16 %v136
    %v292 = vunpack.c.h.b16 %v136
    %v293 = vunpack.c.l.b16 %v137
    %v294 = vunpack.c.h.b16 %v137
    %v295 = vunpack.c.l.b16 %v138
    %v296 = vunpack.c.h.b16 %v138
    %v297 = vunpack.c.l.b16 %v139
    %v298 = vunpack.c.h.b16 %v139
    %v299 = vunpack.c.l.b16 %v140
    %v300 = vunpack.c.h.b16 %v140
    %v301 = vunpack.c.l.b16 %v141
    %v302 = vunpack.c.h.b16 %v141
    %v303 = vunpack.c.l.b16 %v142
    %v304 = vunpack.c.h.b16 %v142
    %v305 = vunpack.c.l.b16 %v143
    %v306 = vunpack.c.h.b16 %v143
    %v307 = vunpack.c.l.b16 %v144
    %v308 = vunpack.c.h.b16 %v144
    %v309 = vunpack.c.l.b16 %v145
    %v310 = vunpack.c.h.b16 %v145
    %v311 = vunpack.c.l.b16 %v146
    %v312 = vunpack.c.h.b16 %v146
    %v313 = vunpack.c.l.b16 %v147
    %v314 = vunpack.c.h.b16 %v147
    %v315 = vunpack.c.l.b16 %v148
    %v316 = vunpack.c.h.b16 %v148
    %v317 = vunpack.c.l.b16 %v149
    %v318 = vunpack.c.h.b16 %v149
    %v319 = vunpack.c.l.b16 %v150
    %v320 = vunpack.c.h.b16 %v150
    %v321 = vunpack.c.l.b16 %v151
    %v322 = vunpack.c.h.b16 %v151
    %v323 = vunpack.c.l.b16 %v152
    %v324 = vunpack.c.h.b16 %v152
    %v325 = vunpack.c.l.b16 %v153
    %v326 = vunpack.c.h.b16 %v153
    %v327 = vunpack.c.l.b16 %v154
    %v328 = vunpack.c.h.b16 %v154
    %v329 = vunpack.c.l.b16 %v155
    %v330 = vunpack.c.h.b16 %v155
    %v331 = vunpack.c.l.b16 %v156
    %v332 = vunpack.c.h.b16 %v156
    %v333 = vunpack.c.l.b16 %v157
    %v334 = vunpack.c.h.b16 %v157
    %v335 = vunpack.c.l.b16 %v158
    %v336 = vunpack.c.h.b16 %v158
    %v337 = vunpack.c.l.b16 %v159
    %v338 = vunpack.c.h.b16 %v159
    %v339 = vunpack.c.l.b16 %v160
    %v340 = vunpack.c.h.b16 %v160
    %v341 = vunpack.c.l.b16 %v161
    %v342 = vunpack.c.h.b16 %v161
    %v343 = vunpack.c.l.b16 %v162
    %v344 = vunpack.c.h.b16 %v162
    %v345 = vunpack.c.l.b16 %v163
    %v346 = vunpack.c.h.b16 %v163
    %v347 = vunpack.c.l.b16 %v164
    %v348 = vunpack.c.h.b16 %v164
    %v349 = vunpack.c.l.b16 %v165
    %v350 = vunpack.c.h.b16 %v165
    %v351 = vunpack.c.l.b16 %v166
    %v352 = vunpack.c.h.b16 %v166
    %v353 = vunpack.c.l.b16 %v167
    %v354 = vunpack.c.h.b16 %v167
    %v355 = vunpack.c.l.b16 %v168
    %v356 = vunpack.c.h.b16 %v168
    %v357 = vunpack.c.l.b16 %v169
    %v358 = vunpack.c.h.b16 %v169
    %v359 = vunpack.c.l.b16 %v170
    %v360 = vunpack.c.h.b16 %v170
    %v361 = vunpack.c.l.b16 %v171
    %v362 = vunpack.c.h.b16 %v171
    %v363 = vunpack.c.l.b16 %v172
    %v364 = vunpack.c.h.b16 %v172
    %v365 = vunpack.c.l.b16 %v173
    %v366 = vunpack.c.h.b16 %v173
    %v367 = vunpack.c.l.b16 %v174
    %v368 = vunpack.c.h.b16 %v174
    %v369 = vunpack.c.l.b16 %v175
    %v370 = vunpack.c.h.b16 %v175
    %v371 = vunpack.c.l.b16 %v176
    %v372 = vunpack.c.h.b16 %v176
    %v373 = vunpack.c.l.b16 %v177
    %v374 = vunpack.c.h.b16 %v177
    %v375 = vunpack.c.l.b16 %v178
    %v376 = vunpack.c.h.b16 %v178
    %v377 = vunpack.c.l.b16 %v179
    %v378 = vunpack.c.h.b16 %v179
    %v379 = vunpack.c.l.b16 %v180
    %v380 = vunpack.c.h.b16 %v180
    %v381 = vunpack.c.l.b16 %v181
    %v382 = vunpack.c.h.b16 %v181
    %v383 = vunpack.c.l.b16 %v182
    %v384 = vunpack.c.h.b16 %v182
    %v385 = vpack.c.b16 %v261, %v257
    %v386 = vpack.c.b16 %v262, %v258
    %v387 = vpack.c.b16 %v263, %v259
    %v388 = vpack.c.b16 %v264, %v260
    %v389 = vpack.c.b16 %v269, %v265
    %v390 = vpack.c.b16 %v270, %v266
    %v391 = vpack.c.b16 %v271, %v267
    %v392 = vpack.c.b16 %v272, %v268
    %v393 = vpack.c.b16 %v277, %v273
    %v394 = vpack.c.b16 %v278, %v274
    %v395 = vpack.c.b16 %v279, %v275
    %v396 = vpack.c.b16 %v280, %v276
    %v397 = vpack.c.b16 %v285, %v281
    %v398 = vpack.c.b16 %v286, %v282
    %v399 = vpack.c.b16 %v287, %v283
    %v400 = vpack.c.b16 %v288, %v284
    %v401 = vpack.c.b16 %v293, %v289
    %v402 = vpack.c.b16 %v294, %v290
    %v403 = vpack.c.b16 %v295, %v291
    %v404 = vpack.c.b16 %v296, %v292
    %v405 = vpack.c.b16 %v301, %v297
    %v406 = vpack.c.b16 %v302, %v298
    %v407 = vpack.c.b16 %v303, %v299
    %v408 = vpack.c.b16 %v304, %v300
    %v409 = vpack.c.b16 %v309, %v305
    %v410 = vpack.c.b16 %v310, %v306
    %v411 = vpack.c.b16 %v311, %v307
    %v412 = vpack.c.b16 %v312, %v308
    %v413 = vpack.c.b16 %v317, %v313
    %v414 = vpack.c.b16 %v318, %v314
    %v415 = vpack.c.b16 %v319, %v315
    %v416 = vpack.c.b16 %v320, %v316
    %v417 = vpack.c.b16 %v325, %v321
    %v418 = vpack.c.b16 %v326, %v322
    %v419 = vpack.c.b16 %v327, %v323
    %v420 = vpack.c.b16 %v328, %v324
    %v421 = vpack.c.b16 %v333, %v329
    %v422 = vpack.c.b16 %v334, %v330
    %v423 = vpack.c.b16 %v335, %v331
    %v424 = vpack.c.b16 %v336, %v332
    %v425 = vpack.c.b16 %v341, %v337
    %v426 = vpack.c.b16 %v342, %v338
    %v427 = vpack.c.b16 %v343, %v339
    %v428 = vpack.c.b16 %v344, %v340
    %v429 = vpack.c.b16 %v349, %v345
    %v430 = vpack.c.b16 %v350, %v346
    %v431 = vpack.c.b16 %v351, %v347
    %v432 = vpack.c.b16 %v352, %v348
    %v433 = vpack.c.b16 %v357, %v353
    %v434 = vpack.c.b16 %v358, %v354
    %v435 = vpack.c.b16 %v359, %v355
    %v436 = vpack.c.b16 %v360, %v356
    %v437 = vpack.c.b16 %v365, %v361
    %v438 = vpack.c.b16 %v366, %v362
    %v439 = vpack.c.b16 %v367, %v363
    %v440 = vpack.c.b16 %v368, %v364
    %v441 = vpack.c.b16 %v373, %v369
    %v442 = vpack.c.b16 %v374, %v370
    %v443 = vpack.c.b16 %v375, %v371
    %v444 = vpack.c.b16 %v376, %v372
    %v445 = vpack.c.b16 %v381, %v377
    %v446 = vpack.c.b16 %v382, %v378
    %v447 = vpack.c.b16 %v383, %v379
    %v448 = vpack.c.b16 %v384, %v380
    %513 = vmatpush.bf16.msra.mxu0 %v413
    %514 = vmatpush.bf16.msra.mxu0 %v409
    %515 = vmatpush.bf16.msra.mxu0 %v405
    %516 = vmatpush.bf16.msra.mxu0 %v401
    %517 = vmatpush.bf16.msra.mxu0 %v397
    %518 = vmatpush.bf16.msra.mxu0 %v393
    %519 = vmatpush.bf16.msra.mxu0 %v389
    %520 = vmatpush.bf16.msra.mxu0 %v385
    %521 = vmatmul.bf16.gmra.mxu0 %v115
    %v522 = vpop.f32.mrf.mxu0
    %v523 = vadd.f32 %v185, %v522
    %v524 = vpop.f32.mrf.mxu0
    %525 = vdwg.mxu0
    %526 = vmatpush.bf16.msra.mxu0 %v445
    %527 = vmatpush.bf16.msra.mxu0 %v441
    %528 = vmatpush.bf16.msra.mxu0 %v437
    %529 = vmatpush.bf16.msra.mxu0 %v433
    %530 = vmatpush.bf16.msra.mxu0 %v429
    %531 = vmatpush.bf16.msra.mxu0 %v425
    %532 = vmatpush.bf16.msra.mxu0 %v421
    %533 = vmatpush.bf16.msra.mxu0 %v417
    %534 = vmatmul.bf16.gmra.mxu0 %v118
    %v535 = vpop.f32.mrf.mxu0
    %v536 = vadd.f32 %v523, %v535
    %v537 = vpop.f32.mrf.mxu0
    %538 = vdwg.mxu0
    %539 = vmatpush.bf16.msra.mxu0 %v414
    %540 = vmatpush.bf16.msra.mxu0 %v410
    %541 = vmatpush.bf16.msra.mxu0 %v406
    %542 = vmatpush.bf16.msra.mxu0 %v402
    %543 = vmatpush.bf16.msra.mxu0 %v398
    %544 = vmatpush.bf16.msra.mxu0 %v394
    %545 = vmatpush.bf16.msra.mxu0 %v390
    %546 = vmatpush.bf16.msra.mxu0 %v386
    %547 = vmatmul.bf16.gmra.mxu0 %v115
    %v548 = vpop.f32.mrf.mxu0
    %v549 = vadd.f32 %v186, %v548
    %v550 = vpop.f32.mrf.mxu0
    %551 = vdwg.mxu0
    %552 = vmatpush.bf16.msra.mxu0 %v446
    %553 = vmatpush.bf16.msra.mxu0 %v442
    %554 = vmatpush.bf16.msra.mxu0 %v438
    %555 = vmatpush.bf16.msra.mxu0 %v434
    %556 = vmatpush.bf16.msra.mxu0 %v430
    %557 = vmatpush.bf16.msra.mxu0 %v426
    %558 = vmatpush.bf16.msra.mxu0 %v422
    %559 = vmatpush.bf16.msra.mxu0 %v418
    %560 = vmatmul.bf16.gmra.mxu0 %v118
    %v561 = vpop.f32.mrf.mxu0
    %v562 = vadd.f32 %v549, %v561
    %v563 = vpop.f32.mrf.mxu0
    %564 = vdwg.mxu0
    %565 = vmatpush.bf16.msra.mxu0 %v415
    %566 = vmatpush.bf16.msra.mxu0 %v411
    %567 = vmatpush.bf16.msra.mxu0 %v407
    %568 = vmatpush.bf16.msra.mxu0 %v403
    %569 = vmatpush.bf16.msra.mxu0 %v399
    %570 = vmatpush.bf16.msra.mxu0 %v395
    %571 = vmatpush.bf16.msra.mxu0 %v391
    %572 = vmatpush.bf16.msra.mxu0 %v387
    %573 = vmatmul.bf16.gmra.mxu0 %v115
    %v574 = vpop.f32.mrf.mxu0
    %v575 = vadd.f32 %v187, %v574
    %v576 = vpop.f32.mrf.mxu0
    %577 = vdwg.mxu0
    %578 = vmatpush.bf16.msra.mxu0 %v447
    %579 = vmatpush.bf16.msra.mxu0 %v443
    %580 = vmatpush.bf16.msra.mxu0 %v439
    %581 = vmatpush.bf16.msra.mxu0 %v435
    %582 = vmatpush.bf16.msra.mxu0 %v431
    %583 = vmatpush.bf16.msra.mxu0 %v427
    %584 = vmatpush.bf16.msra.mxu0 %v423
    %585 = vmatpush.bf16.msra.mxu0 %v419
    %586 = vmatmul.bf16.gmra.mxu0 %v118
    %v587 = vpop.f32.mrf.mxu0
    %v588 = vadd.f32 %v575, %v587
    %v589 = vpop.f32.mrf.mxu0
    %590 = vdwg.mxu0
    %591 = vmatpush.bf16.msra.mxu0 %v416
    %592 = vmatpush.bf16.msra.mxu0 %v412
    %593 = vmatpush.bf16.msra.mxu0 %v408
    %594 = vmatpush.bf16.msra.mxu0 %v404
    %595 = vmatpush.bf16.msra.mxu0 %v400
    %596 = vmatpush.bf16.msra.mxu0 %v396
    %597 = vmatpush.bf16.msra.mxu0 %v392
    %598 = vmatpush.bf16.msra.mxu0 %v388
    %599 = vmatmul.bf16.gmra.mxu0 %v115
    %v600 = vpop.f32.mrf.mxu0
    %v601 = vadd.f32 %v188, %v600
    %v602 = vpop.f32.mrf.mxu0
    %603 = vdwg.mxu0
    %604 = vmatpush.bf16.msra.mxu0 %v448
    %605 = vmatpush.bf16.msra.mxu0 %v444
    %606 = vmatpush.bf16.msra.mxu0 %v440
    %607 = vmatpush.bf16.msra.mxu0 %v436
    %608 = vmatpush.bf16.msra.mxu0 %v432
    %609 = vmatpush.bf16.msra.mxu0 %v428
    %610 = vmatpush.bf16.msra.mxu0 %v424
    %611 = vmatpush.bf16.msra.mxu0 %v420
    %612 = vmatmul.bf16.gmra.mxu0 %v118
    %v613 = vpop.f32.mrf.mxu0
    %v614 = vadd.f32 %v601, %v613
    %v615 = vpop.f32.mrf.mxu0
    %616 = vdwg.mxu0
    %v617 = vxor.u32 %v536, 2147483648
    %v618 = vmul.f32 %v617, 1.442695
    %v619 = vpow.pop %v618
    %v620 = vadd.f32 %v619, 1.0
    %v621 = vrcp.pop %v620
    %v622 = vmul.f32 %v620, %v621
    %v623 = vsub.f32 1.0, %v622
    %v624 = vmul.f32 %v621, %v623
    %v625 = vadd.f32 %v621, %v624
    %vm626 = vweird.f32 %v620
    %vm627 = vweird.f32 %v621
    %vm628 = vmor %vm626, %vm627
    %v629 = vsel %vm628, %v621, %v625
    %v630 = vand.u32 2147483647, %v620
    %vm631 = vcmp.eq.f32.partialorder %v630, 8.507059e+37
    %v632 = vand.u32 %v620, 2147483648
    %v633 = vor.u32 1.1754944e-38, %v632
    %v634 = vsel %vm631, %v633, %v629
    %v635 = vmul.f32 1.0, %v634
    %v636 = vxor.u32 %v562, 2147483648
    %v637 = vmul.f32 %v636, 1.442695
    %v638 = vpow.pop %v637
    %v639 = vadd.f32 %v638, 1.0
    %v640 = vrcp.pop %v639
    %v641 = vmul.f32 %v639, %v640
    %v642 = vsub.f32 1.0, %v641
    %v643 = vmul.f32 %v640, %v642
    %v644 = vadd.f32 %v640, %v643
    %vm645 = vweird.f32 %v639
    %vm646 = vweird.f32 %v640
    %vm647 = vmor %vm645, %vm646
    %v648 = vsel %vm647, %v640, %v644
    %v649 = vand.u32 2147483647, %v639
    %vm650 = vcmp.eq.f32.partialorder %v649, 8.507059e+37
    %v651 = vand.u32 %v639, 2147483648
    %v652 = vor.u32 1.1754944e-38, %v651
    %v653 = vsel %vm650, %v652, %v648
    %v654 = vmul.f32 1.0, %v653
    %v655 = vtanh.pop %v588
    %v656 = vxor.u32 %v614, 2147483648
    %v657 = vmul.f32 %v656, 1.442695
    %v658 = vpow.pop %v657
    %v659 = vadd.f32 %v658, 1.0
    %v660 = vrcp.pop %v659
    %v661 = vmul.f32 %v659, %v660
    %v662 = vsub.f32 1.0, %v661
    %v663 = vmul.f32 %v660, %v662
    %v664 = vadd.f32 %v660, %v663
    %vm665 = vweird.f32 %v659
    %vm666 = vweird.f32 %v660
    %vm667 = vmor %vm665, %vm666
    %v668 = vsel %vm667, %v660, %v664
    %v669 = vand.u32 2147483647, %v659
    %vm670 = vcmp.eq.f32.partialorder %v669, 8.507059e+37
    %v671 = vand.u32 %v659, 2147483648
    %v672 = vor.u32 1.1754944e-38, %v671
    %v673 = vsel %vm670, %v672, %v668
    %v674 = vmul.f32 1.0, %v673
    %v675 = vmul.f32 %v654, %v117
    %v676 = vmul.f32 %v635, %v655
    %v677 = vadd.f32 %v675, %v676
    %v678 = vtanh.pop %v677
    %v679 = vmul.f32 %v674, %v678
    %680 = vst [vmem:[#allocation12] sm:$0xff] %v679
    %681 = vst [vmem:[#allocation14] sm:$0xff] %v677
    %v682 = vpack.c.bf16 %v679, %v679
    %s683 = scalar_lea.vmem [#allocation2], 8
    %v684 = vld [vmem:[%s683] sm:$0xff]
    %s685 = scalar_lea.vmem [#allocation5], 8
    %v686 = vld [vmem:[%s685] sm:$0xff]
    %v687 = vpack.c.bf16 %v684, %v684
    %v688 = vld [vmem:[#allocation8] sm:$0xff]
    %v689 = vld [vmem:[#allocation8 + $0x8] sm:$0xff]
    %v690 = vld [vmem:[#allocation8 + $0x10] sm:$0xff]
    %v691 = vld [vmem:[#allocation8 + $0x18] sm:$0xff]
    %v692 = vld [vmem:[#allocation8 + $0x20] sm:$0xff]
    %v693 = vld [vmem:[#allocation8 + $0x28] sm:$0xff]
    %v694 = vld [vmem:[#allocation8 + $0x30] sm:$0xff]
    %v695 = vld [vmem:[#allocation8 + $0x38] sm:$0xff]
    %v696 = vld [vmem:[#allocation8 + $0x40] sm:$0xff]
    %v697 = vld [vmem:[#allocation8 + $0x48] sm:$0xff]
    %v698 = vld [vmem:[#allocation8 + $0x50] sm:$0xff]
    %v699 = vld [vmem:[#allocation8 + $0x58] sm:$0xff]
    %v700 = vld [vmem:[#allocation8 + $0x60] sm:$0xff]
    %v701 = vld [vmem:[#allocation8 + $0x68] sm:$0xff]
    %v702 = vld [vmem:[#allocation8 + $0x70] sm:$0xff]
    %v703 = vld [vmem:[#allocation8 + $0x78] sm:$0xff]
    %v704 = vld [vmem:[#allocation8 + $0x80] sm:$0xff]
    %v705 = vld [vmem:[#allocation8 + $0x88] sm:$0xff]
    %v706 = vld [vmem:[#allocation8 + $0x90] sm:$0xff]
    %v707 = vld [vmem:[#allocation8 + $0x98] sm:$0xff]
    %v708 = vld [vmem:[#allocation8 + $0xa0] sm:$0xff]
    %v709 = vld [vmem:[#allocation8 + $0xa8] sm:$0xff]
    %v710 = vld [vmem:[#allocation8 + $0xb0] sm:$0xff]
    %v711 = vld [vmem:[#allocation8 + $0xb8] sm:$0xff]
    %v712 = vld [vmem:[#allocation8 + $0xc0] sm:$0xff]
    %v713 = vld [vmem:[#allocation8 + $0xc8] sm:$0xff]
    %v714 = vld [vmem:[#allocation8 + $0xd0] sm:$0xff]
    %v715 = vld [vmem:[#allocation8 + $0xd8] sm:$0xff]
    %v716 = vld [vmem:[#allocation8 + $0xe0] sm:$0xff]
    %v717 = vld [vmem:[#allocation8 + $0xe8] sm:$0xff]
    %v718 = vld [vmem:[#allocation8 + $0xf0] sm:$0xff]
    %v719 = vld [vmem:[#allocation8 + $0xf8] sm:$0xff]
    %v720 = vld [vmem:[#allocation8 + $0x100] sm:$0xff]
    %v721 = vld [vmem:[#allocation8 + $0x108] sm:$0xff]
    %v722 = vld [vmem:[#allocation8 + $0x110] sm:$0xff]
    %v723 = vld [vmem:[#allocation8 + $0x118] sm:$0xff]
    %v724 = vld [vmem:[#allocation8 + $0x120] sm:$0xff]
    %v725 = vld [vmem:[#allocation8 + $0x128] sm:$0xff]
    %v726 = vld [vmem:[#allocation8 + $0x130] sm:$0xff]
    %v727 = vld [vmem:[#allocation8 + $0x138] sm:$0xff]
    %v728 = vld [vmem:[#allocation8 + $0x140] sm:$0xff]
    %v729 = vld [vmem:[#allocation8 + $0x148] sm:$0xff]
    %v730 = vld [vmem:[#allocation8 + $0x150] sm:$0xff]
    %v731 = vld [vmem:[#allocation8 + $0x158] sm:$0xff]
    %v732 = vld [vmem:[#allocation8 + $0x160] sm:$0xff]
    %v733 = vld [vmem:[#allocation8 + $0x168] sm:$0xff]
    %v734 = vld [vmem:[#allocation8 + $0x170] sm:$0xff]
    %v735 = vld [vmem:[#allocation8 + $0x178] sm:$0xff]
    %v736 = vld [vmem:[#allocation8 + $0x180] sm:$0xff]
    %v737 = vld [vmem:[#allocation8 + $0x188] sm:$0xff]
    %v738 = vld [vmem:[#allocation8 + $0x190] sm:$0xff]
    %v739 = vld [vmem:[#allocation8 + $0x198] sm:$0xff]
    %v740 = vld [vmem:[#allocation8 + $0x1a0] sm:$0xff]
    %v741 = vld [vmem:[#allocation8 + $0x1a8] sm:$0xff]
    %v742 = vld [vmem:[#allocation8 + $0x1b0] sm:$0xff]
    %v743 = vld [vmem:[#allocation8 + $0x1b8] sm:$0xff]
    %v744 = vld [vmem:[#allocation8 + $0x1c0] sm:$0xff]
    %v745 = vld [vmem:[#allocation8 + $0x1c8] sm:$0xff]
    %v746 = vld [vmem:[#allocation8 + $0x1d0] sm:$0xff]
    %v747 = vld [vmem:[#allocation8 + $0x1d8] sm:$0xff]
    %v748 = vld [vmem:[#allocation8 + $0x1e0] sm:$0xff]
    %v749 = vld [vmem:[#allocation8 + $0x1e8] sm:$0xff]
    %v750 = vld [vmem:[#allocation8 + $0x1f0] sm:$0xff]
    %v751 = vld [vmem:[#allocation8 + $0x1f8] sm:$0xff]
    %v752 = vld [vmem:[%s6] sm:$0xf]
    %v754 = vperm.slane %v752, 0
    %v755 = vperm.slane %v752, 1
    %v756 = vperm.slane %v752, 2
    %v757 = vperm.slane %v752, 3
    %v826 = vunpack.c.l.b16 %v688
    %v827 = vunpack.c.h.b16 %v688
    %v828 = vunpack.c.l.b16 %v689
    %v829 = vunpack.c.h.b16 %v689
    %v830 = vunpack.c.l.b16 %v690
    %v831 = vunpack.c.h.b16 %v690
    %v832 = vunpack.c.l.b16 %v691
    %v833 = vunpack.c.h.b16 %v691
    %v834 = vunpack.c.l.b16 %v692
    %v835 = vunpack.c.h.b16 %v692
    %v836 = vunpack.c.l.b16 %v693
    %v837 = vunpack.c.h.b16 %v693
    %v838 = vunpack.c.l.b16 %v694
    %v839 = vunpack.c.h.b16 %v694
    %v840 = vunpack.c.l.b16 %v695
    %v841 = vunpack.c.h.b16 %v695
    %v842 = vunpack.c.l.b16 %v696
    %v843 = vunpack.c.h.b16 %v696
    %v844 = vunpack.c.l.b16 %v697
    %v845 = vunpack.c.h.b16 %v697
    %v846 = vunpack.c.l.b16 %v698
    %v847 = vunpack.c.h.b16 %v698
    %v848 = vunpack.c.l.b16 %v699
    %v849 = vunpack.c.h.b16 %v699
    %v850 = vunpack.c.l.b16 %v700
    %v851 = vunpack.c.h.b16 %v700
    %v852 = vunpack.c.l.b16 %v701
    %v853 = vunpack.c.h.b16 %v701
    %v854 = vunpack.c.l.b16 %v702
    %v855 = vunpack.c.h.b16 %v702
    %v856 = vunpack.c.l.b16 %v703
    %v857 = vunpack.c.h.b16 %v703
    %v858 = vunpack.c.l.b16 %v704
    %v859 = vunpack.c.h.b16 %v704
    %v860 = vunpack.c.l.b16 %v705
    %v861 = vunpack.c.h.b16 %v705
    %v862 = vunpack.c.l.b16 %v706
    %v863 = vunpack.c.h.b16 %v706
    %v864 = vunpack.c.l.b16 %v707
    %v865 = vunpack.c.h.b16 %v707
    %v866 = vunpack.c.l.b16 %v708
    %v867 = vunpack.c.h.b16 %v708
    %v868 = vunpack.c.l.b16 %v709
    %v869 = vunpack.c.h.b16 %v709
    %v870 = vunpack.c.l.b16 %v710
    %v871 = vunpack.c.h.b16 %v710
    %v872 = vunpack.c.l.b16 %v711
    %v873 = vunpack.c.h.b16 %v711
    %v874 = vunpack.c.l.b16 %v712
    %v875 = vunpack.c.h.b16 %v712
    %v876 = vunpack.c.l.b16 %v713
    %v877 = vunpack.c.h.b16 %v713
    %v878 = vunpack.c.l.b16 %v714
    %v879 = vunpack.c.h.b16 %v714
    %v880 = vunpack.c.l.b16 %v715
    %v881 = vunpack.c.h.b16 %v715
    %v882 = vunpack.c.l.b16 %v716
    %v883 = vunpack.c.h.b16 %v716
    %v884 = vunpack.c.l.b16 %v717
    %v885 = vunpack.c.h.b16 %v717
    %v886 = vunpack.c.l.b16 %v718
    %v887 = vunpack.c.h.b16 %v718
    %v888 = vunpack.c.l.b16 %v719
    %v889 = vunpack.c.h.b16 %v719
    %v890 = vunpack.c.l.b16 %v720
    %v891 = vunpack.c.h.b16 %v720
    %v892 = vunpack.c.l.b16 %v721
    %v893 = vunpack.c.h.b16 %v721
    %v894 = vunpack.c.l.b16 %v722
    %v895 = vunpack.c.h.b16 %v722
    %v896 = vunpack.c.l.b16 %v723
    %v897 = vunpack.c.h.b16 %v723
    %v898 = vunpack.c.l.b16 %v724
    %v899 = vunpack.c.h.b16 %v724
    %v900 = vunpack.c.l.b16 %v725
    %v901 = vunpack.c.h.b16 %v725
    %v902 = vunpack.c.l.b16 %v726
    %v903 = vunpack.c.h.b16 %v726
    %v904 = vunpack.c.l.b16 %v727
    %v905 = vunpack.c.h.b16 %v727
    %v906 = vunpack.c.l.b16 %v728
    %v907 = vunpack.c.h.b16 %v728
    %v908 = vunpack.c.l.b16 %v729
    %v909 = vunpack.c.h.b16 %v729
    %v910 = vunpack.c.l.b16 %v730
    %v911 = vunpack.c.h.b16 %v730
    %v912 = vunpack.c.l.b16 %v731
    %v913 = vunpack.c.h.b16 %v731
    %v914 = vunpack.c.l.b16 %v732
    %v915 = vunpack.c.h.b16 %v732
    %v916 = vunpack.c.l.b16 %v733
    %v917 = vunpack.c.h.b16 %v733
    %v918 = vunpack.c.l.b16 %v734
    %v919 = vunpack.c.h.b16 %v734
    %v920 = vunpack.c.l.b16 %v735
    %v921 = vunpack.c.h.b16 %v735
    %v922 = vunpack.c.l.b16 %v736
    %v923 = vunpack.c.h.b16 %v736
    %v924 = vunpack.c.l.b16 %v737
    %v925 = vunpack.c.h.b16 %v737
    %v926 = vunpack.c.l.b16 %v738
    %v927 = vunpack.c.h.b16 %v738
    %v928 = vunpack.c.l.b16 %v739
    %v929 = vunpack.c.h.b16 %v739
    %v930 = vunpack.c.l.b16 %v740
    %v931 = vunpack.c.h.b16 %v740
    %v932 = vunpack.c.l.b16 %v741
    %v933 = vunpack.c.h.b16 %v741
    %v934 = vunpack.c.l.b16 %v742
    %v935 = vunpack.c.h.b16 %v742
    %v936 = vunpack.c.l.b16 %v743
    %v937 = vunpack.c.h.b16 %v743
    %v938 = vunpack.c.l.b16 %v744
    %v939 = vunpack.c.h.b16 %v744
    %v940 = vunpack.c.l.b16 %v745
    %v941 = vunpack.c.h.b16 %v745
    %v942 = vunpack.c.l.b16 %v746
    %v943 = vunpack.c.h.b16 %v746
    %v944 = vunpack.c.l.b16 %v747
    %v945 = vunpack.c.h.b16 %v747
    %v946 = vunpack.c.l.b16 %v748
    %v947 = vunpack.c.h.b16 %v748
    %v948 = vunpack.c.l.b16 %v749
    %v949 = vunpack.c.h.b16 %v749
    %v950 = vunpack.c.l.b16 %v750
    %v951 = vunpack.c.h.b16 %v750
    %v952 = vunpack.c.l.b16 %v751
    %v953 = vunpack.c.h.b16 %v751
    %v954 = vpack.c.b16 %v830, %v826
    %v955 = vpack.c.b16 %v831, %v827
    %v956 = vpack.c.b16 %v832, %v828
    %v957 = vpack.c.b16 %v833, %v829
    %v958 = vpack.c.b16 %v838, %v834
    %v959 = vpack.c.b16 %v839, %v835
    %v960 = vpack.c.b16 %v840, %v836
    %v961 = vpack.c.b16 %v841, %v837
    %v962 = vpack.c.b16 %v846, %v842
    %v963 = vpack.c.b16 %v847, %v843
    %v964 = vpack.c.b16 %v848, %v844
    %v965 = vpack.c.b16 %v849, %v845
    %v966 = vpack.c.b16 %v854, %v850
    %v967 = vpack.c.b16 %v855, %v851
    %v968 = vpack.c.b16 %v856, %v852
    %v969 = vpack.c.b16 %v857, %v853
    %v970 = vpack.c.b16 %v862, %v858
    %v971 = vpack.c.b16 %v863, %v859
    %v972 = vpack.c.b16 %v864, %v860
    %v973 = vpack.c.b16 %v865, %v861
    %v974 = vpack.c.b16 %v870, %v866
    %v975 = vpack.c.b16 %v871, %v867
    %v976 = vpack.c.b16 %v872, %v868
    %v977 = vpack.c.b16 %v873, %v869
    %v978 = vpack.c.b16 %v878, %v874
    %v979 = vpack.c.b16 %v879, %v875
    %v980 = vpack.c.b16 %v880, %v876
    %v981 = vpack.c.b16 %v881, %v877
    %v982 = vpack.c.b16 %v886, %v882
    %v983 = vpack.c.b16 %v887, %v883
    %v984 = vpack.c.b16 %v888, %v884
    %v985 = vpack.c.b16 %v889, %v885
    %v986 = vpack.c.b16 %v894, %v890
    %v987 = vpack.c.b16 %v895, %v891
    %v988 = vpack.c.b16 %v896, %v892
    %v989 = vpack.c.b16 %v897, %v893
    %v990 = vpack.c.b16 %v902, %v898
    %v991 = vpack.c.b16 %v903, %v899
    %v992 = vpack.c.b16 %v904, %v900
    %v993 = vpack.c.b16 %v905, %v901
    %v994 = vpack.c.b16 %v910, %v906
    %v995 = vpack.c.b16 %v911, %v907
    %v996 = vpack.c.b16 %v912, %v908
    %v997 = vpack.c.b16 %v913, %v909
    %v998 = vpack.c.b16 %v918, %v914
    %v999 = vpack.c.b16 %v919, %v915
    %v1000 = vpack.c.b16 %v920, %v916
    %v1001 = vpack.c.b16 %v921, %v917
    %v1002 = vpack.c.b16 %v926, %v922
    %v1003 = vpack.c.b16 %v927, %v923
    %v1004 = vpack.c.b16 %v928, %v924
    %v1005 = vpack.c.b16 %v929, %v925
    %v1006 = vpack.c.b16 %v934, %v930
    %v1007 = vpack.c.b16 %v935, %v931
    %v1008 = vpack.c.b16 %v936, %v932
    %v1009 = vpack.c.b16 %v937, %v933
    %v1010 = vpack.c.b16 %v942, %v938
    %v1011 = vpack.c.b16 %v943, %v939
    %v1012 = vpack.c.b16 %v944, %v940
    %v1013 = vpack.c.b16 %v945, %v941
    %v1014 = vpack.c.b16 %v950, %v946
    %v1015 = vpack.c.b16 %v951, %v947
    %v1016 = vpack.c.b16 %v952, %v948
    %v1017 = vpack.c.b16 %v953, %v949
    %1082 = vmatpush.bf16.msra.mxu0 %v982
    %1083 = vmatpush.bf16.msra.mxu0 %v978
    %1084 = vmatpush.bf16.msra.mxu0 %v974
    %1085 = vmatpush.bf16.msra.mxu0 %v970
    %1086 = vmatpush.bf16.msra.mxu0 %v966
    %1087 = vmatpush.bf16.msra.mxu0 %v962
    %1088 = vmatpush.bf16.msra.mxu0 %v958
    %1089 = vmatpush.bf16.msra.mxu0 %v954
    %1090 = vmatmul.bf16.gmra.mxu0 %v682
    %v1091 = vpop.f32.mrf.mxu0
    %v1092 = vadd.f32 %v754, %v1091
    %v1093 = vpop.f32.mrf.mxu0
    %1094 = vdwg.mxu0
    %1095 = vmatpush.bf16.msra.mxu0 %v1014
    %1096 = vmatpush.bf16.msra.mxu0 %v1010
    %1097 = vmatpush.bf16.msra.mxu0 %v1006
    %1098 = vmatpush.bf16.msra.mxu0 %v1002
    %1099 = vmatpush.bf16.msra.mxu0 %v998
    %1100 = vmatpush.bf16.msra.mxu0 %v994
    %1101 = vmatpush.bf16.msra.mxu0 %v990
    %1102 = vmatpush.bf16.msra.mxu0 %v986
    %1103 = vmatmul.bf16.gmra.mxu0 %v687
    %v1104 = vpop.f32.mrf.mxu0
    %v1105 = vadd.f32 %v1092, %v1104
    %v1106 = vpop.f32.mrf.mxu0
    %1107 = vdwg.mxu0
    %1108 = vmatpush.bf16.msra.mxu0 %v983
    %1109 = vmatpush.bf16.msra.mxu0 %v979
    %1110 = vmatpush.bf16.msra.mxu0 %v975
    %1111 = vmatpush.bf16.msra.mxu0 %v971
    %1112 = vmatpush.bf16.msra.mxu0 %v967
    %1113 = vmatpush.bf16.msra.mxu0 %v963
    %1114 = vmatpush.bf16.msra.mxu0 %v959
    %1115 = vmatpush.bf16.msra.mxu0 %v955
    %1116 = vmatmul.bf16.gmra.mxu0 %v682
    %v1117 = vpop.f32.mrf.mxu0
    %v1118 = vadd.f32 %v755, %v1117
    %v1119 = vpop.f32.mrf.mxu0
    %1120 = vdwg.mxu0
    %1121 = vmatpush.bf16.msra.mxu0 %v1015
    %1122 = vmatpush.bf16.msra.mxu0 %v1011
    %1123 = vmatpush.bf16.msra.mxu0 %v1007
    %1124 = vmatpush.bf16.msra.mxu0 %v1003
    %1125 = vmatpush.bf16.msra.mxu0 %v999
    %1126 = vmatpush.bf16.msra.mxu0 %v995
    %1127 = vmatpush.bf16.msra.mxu0 %v991
    %1128 = vmatpush.bf16.msra.mxu0 %v987
    %1129 = vmatmul.bf16.gmra.mxu0 %v687
    %v1130 = vpop.f32.mrf.mxu0
    %v1131 = vadd.f32 %v1118, %v1130
    %v1132 = vpop.f32.mrf.mxu0
    %1133 = vdwg.mxu0
    %1134 = vmatpush.bf16.msra.mxu0 %v984
    %1135 = vmatpush.bf16.msra.mxu0 %v980
    %1136 = vmatpush.bf16.msra.mxu0 %v976
    %1137 = vmatpush.bf16.msra.mxu0 %v972
    %1138 = vmatpush.bf16.msra.mxu0 %v968
    %1139 = vmatpush.bf16.msra.mxu0 %v964
    %1140 = vmatpush.bf16.msra.mxu0 %v960
    %1141 = vmatpush.bf16.msra.mxu0 %v956
    %1142 = vmatmul.bf16.gmra.mxu0 %v682
    %v1143 = vpop.f32.mrf.mxu0
    %v1144 = vadd.f32 %v756, %v1143
    %v1145 = vpop.f32.mrf.mxu0
    %1146 = vdwg.mxu0
    %1147 = vmatpush.bf16.msra.mxu0 %v1016
    %1148 = vmatpush.bf16.msra.mxu0 %v1012
    %1149 = vmatpush.bf16.msra.mxu0 %v1008
    %1150 = vmatpush.bf16.msra.mxu0 %v1004
    %1151 = vmatpush.bf16.msra.mxu0 %v1000
    %1152 = vmatpush.bf16.msra.mxu0 %v996
    %1153 = vmatpush.bf16.msra.mxu0 %v992
    %1154 = vmatpush.bf16.msra.mxu0 %v988
    %1155 = vmatmul.bf16.gmra.mxu0 %v687
    %v1156 = vpop.f32.mrf.mxu0
    %v1157 = vadd.f32 %v1144, %v1156
    %v1158 = vpop.f32.mrf.mxu0
    %1159 = vdwg.mxu0
    %1160 = vmatpush.bf16.msra.mxu0 %v985
    %1161 = vmatpush.bf16.msra.mxu0 %v981
    %1162 = vmatpush.bf16.msra.mxu0 %v977
    %1163 = vmatpush.bf16.msra.mxu0 %v973
    %1164 = vmatpush.bf16.msra.mxu0 %v969
    %1165 = vmatpush.bf16.msra.mxu0 %v965
    %1166 = vmatpush.bf16.msra.mxu0 %v961
    %1167 = vmatpush.bf16.msra.mxu0 %v957
    %1168 = vmatmul.bf16.gmra.mxu0 %v682
    %v1169 = vpop.f32.mrf.mxu0
    %v1170 = vadd.f32 %v757, %v1169
    %v1171 = vpop.f32.mrf.mxu0
    %1172 = vdwg.mxu0
    %1173 = vmatpush.bf16.msra.mxu0 %v1017
    %1174 = vmatpush.bf16.msra.mxu0 %v1013
    %1175 = vmatpush.bf16.msra.mxu0 %v1009
    %1176 = vmatpush.bf16.msra.mxu0 %v1005
    %1177 = vmatpush.bf16.msra.mxu0 %v1001
    %1178 = vmatpush.bf16.msra.mxu0 %v997
    %1179 = vmatpush.bf16.msra.mxu0 %v993
    %1180 = vmatpush.bf16.msra.mxu0 %v989
    %1181 = vmatmul.bf16.gmra.mxu0 %v687
    %v1182 = vpop.f32.mrf.mxu0
    %v1183 = vadd.f32 %v1170, %v1182
    %v1184 = vpop.f32.mrf.mxu0
    %1185 = vdwg.mxu0
    %v1186 = vxor.u32 %v1105, 2147483648
    %v1187 = vmul.f32 %v1186, 1.442695
    %v1188 = vpow.pop %v1187
    %v1189 = vadd.f32 %v1188, 1.0
    %v1190 = vrcp.pop %v1189
    %v1191 = vmul.f32 %v1189, %v1190
    %v1192 = vsub.f32 1.0, %v1191
    %v1193 = vmul.f32 %v1190, %v1192
    %v1194 = vadd.f32 %v1190, %v1193
    %vm1195 = vweird.f32 %v1189
    %vm1196 = vweird.f32 %v1190
    %vm1197 = vmor %vm1195, %vm1196
    %v1198 = vsel %vm1197, %v1190, %v1194
    %v1199 = vand.u32 2147483647, %v1189
    %vm1200 = vcmp.eq.f32.partialorder %v1199, 8.507059e+37
    %v1201 = vand.u32 %v1189, 2147483648
    %v1202 = vor.u32 1.1754944e-38, %v1201
    %v1203 = vsel %vm1200, %v1202, %v1198
    %v1204 = vmul.f32 1.0, %v1203
    %v1205 = vxor.u32 %v1131, 2147483648
    %v1206 = vmul.f32 %v1205, 1.442695
    %v1207 = vpow.pop %v1206
    %v1208 = vadd.f32 %v1207, 1.0
    %v1209 = vrcp.pop %v1208
    %v1210 = vmul.f32 %v1208, %v1209
    %v1211 = vsub.f32 1.0, %v1210
    %v1212 = vmul.f32 %v1209, %v1211
    %v1213 = vadd.f32 %v1209, %v1212
    %vm1214 = vweird.f32 %v1208
    %vm1215 = vweird.f32 %v1209
    %vm1216 = vmor %vm1214, %vm1215
    %v1217 = vsel %vm1216, %v1209, %v1213
    %v1218 = vand.u32 2147483647, %v1208
    %vm1219 = vcmp.eq.f32.partialorder %v1218, 8.507059e+37
    %v1220 = vand.u32 %v1208, 2147483648
    %v1221 = vor.u32 1.1754944e-38, %v1220
    %v1222 = vsel %vm1219, %v1221, %v1217
    %v1223 = vmul.f32 1.0, %v1222
    %v1224 = vtanh.pop %v1157
    %v1225 = vxor.u32 %v1183, 2147483648
    %v1226 = vmul.f32 %v1225, 1.442695
    %v1227 = vpow.pop %v1226
    %v1228 = vadd.f32 %v1227, 1.0
    %v1229 = vrcp.pop %v1228
    %v1230 = vmul.f32 %v1228, %v1229
    %v1231 = vsub.f32 1.0, %v1230
    %v1232 = vmul.f32 %v1229, %v1231
    %v1233 = vadd.f32 %v1229, %v1232
    %vm1234 = vweird.f32 %v1228
    %vm1235 = vweird.f32 %v1229
    %vm1236 = vmor %vm1234, %vm1235
    %v1237 = vsel %vm1236, %v1229, %v1233
    %v1238 = vand.u32 2147483647, %v1228
    %vm1239 = vcmp.eq.f32.partialorder %v1238, 8.507059e+37
    %v1240 = vand.u32 %v1228, 2147483648
    %v1241 = vor.u32 1.1754944e-38, %v1240
    %v1242 = vsel %vm1239, %v1241, %v1237
    %v1243 = vmul.f32 1.0, %v1242
    %v1244 = vmul.f32 %v1223, %v686
    %v1245 = vmul.f32 %v1204, %v1224
    %v1246 = vadd.f32 %v1244, %v1245
    %v1247 = vtanh.pop %v1246
    %v1248 = vmul.f32 %v1243, %v1247
    %s1249 = scalar_lea.vmem [#allocation12], 8
    %1250 = vst [vmem:[%s1249] sm:$0xff] %v1248
    %s1251 = scalar_lea.vmem [#allocation14], 8
    %1252 = vst [vmem:[%s1251] sm:$0xff] %v1246
    %v1253 = vpack.c.bf16 %v1248, %v1248
    %v1254 = vld [vmem:[#allocation10] sm:$0xff]
    %v1255 = vld [vmem:[#allocation10 + $0x8] sm:$0xff]
    %v1256 = vld [vmem:[#allocation10 + $0x10] sm:$0xff]
    %v1257 = vld [vmem:[#allocation10 + $0x18] sm:$0xff]
    %v1258 = vld [vmem:[#allocation10 + $0x20] sm:$0xff]
    %v1259 = vld [vmem:[#allocation10 + $0x28] sm:$0xff]
    %v1260 = vld [vmem:[#allocation10 + $0x30] sm:$0xff]
    %v1261 = vld [vmem:[#allocation10 + $0x38] sm:$0xff]
    %v1262 = vld [vmem:[#allocation10 + $0x40] sm:$0xff]
    %v1263 = vld [vmem:[#allocation10 + $0x48] sm:$0xff]
    %v1264 = vld [vmem:[#allocation10 + $0x50] sm:$0xff]
    %v1265 = vld [vmem:[#allocation10 + $0x58] sm:$0xff]
    %v1266 = vld [vmem:[#allocation10 + $0x60] sm:$0xff]
    %v1267 = vld [vmem:[#allocation10 + $0x68] sm:$0xff]
    %v1268 = vld [vmem:[#allocation10 + $0x70] sm:$0xff]
    %v1269 = vld [vmem:[#allocation10 + $0x78] sm:$0xff]
    %v1270 = vld [vmem:[%s8] sm:$0x3]
    %v1272 = vperm.slane %v1270, 0
    %v1273 = vperm.slane %v1270, 1
    %v1292 = vunpack.c.l.b16 %v1254
    %v1293 = vunpack.c.h.b16 %v1254
    %v1294 = vunpack.c.l.b16 %v1255
    %v1295 = vunpack.c.h.b16 %v1255
    %v1296 = vunpack.c.l.b16 %v1256
    %v1297 = vunpack.c.h.b16 %v1256
    %v1298 = vunpack.c.l.b16 %v1257
    %v1299 = vunpack.c.h.b16 %v1257
    %v1300 = vunpack.c.l.b16 %v1258
    %v1301 = vunpack.c.h.b16 %v1258
    %v1302 = vunpack.c.l.b16 %v1259
    %v1303 = vunpack.c.h.b16 %v1259
    %v1304 = vunpack.c.l.b16 %v1260
    %v1305 = vunpack.c.h.b16 %v1260
    %v1306 = vunpack.c.l.b16 %v1261
    %v1307 = vunpack.c.h.b16 %v1261
    %v1308 = vunpack.c.l.b16 %v1262
    %v1309 = vunpack.c.h.b16 %v1262
    %v1310 = vunpack.c.l.b16 %v1263
    %v1311 = vunpack.c.h.b16 %v1263
    %v1312 = vunpack.c.l.b16 %v1264
    %v1313 = vunpack.c.h.b16 %v1264
    %v1314 = vunpack.c.l.b16 %v1265
    %v1315 = vunpack.c.h.b16 %v1265
    %v1316 = vunpack.c.l.b16 %v1266
    %v1317 = vunpack.c.h.b16 %v1266
    %v1318 = vunpack.c.l.b16 %v1267
    %v1319 = vunpack.c.h.b16 %v1267
    %v1320 = vunpack.c.l.b16 %v1268
    %v1321 = vunpack.c.h.b16 %v1268
    %v1322 = vunpack.c.l.b16 %v1269
    %v1323 = vunpack.c.h.b16 %v1269
    %v1324 = vpack.c.b16 %v1294, %v1292
    %v1325 = vpack.c.b16 %v1295, %v1293
    %v1326 = vpack.c.b16 %v1298, %v1296
    %v1327 = vpack.c.b16 %v1299, %v1297
    %v1328 = vpack.c.b16 %v1302, %v1300
    %v1329 = vpack.c.b16 %v1303, %v1301
    %v1330 = vpack.c.b16 %v1306, %v1304
    %v1331 = vpack.c.b16 %v1307, %v1305
    %v1332 = vpack.c.b16 %v1310, %v1308
    %v1333 = vpack.c.b16 %v1311, %v1309
    %v1334 = vpack.c.b16 %v1314, %v1312
    %v1335 = vpack.c.b16 %v1315, %v1313
    %v1336 = vpack.c.b16 %v1318, %v1316
    %v1337 = vpack.c.b16 %v1319, %v1317
    %v1338 = vpack.c.b16 %v1322, %v1320
    %v1339 = vpack.c.b16 %v1323, %v1321
    %1356 = vmatpush.bf16.msra.mxu0 %v1338
    %1357 = vmatpush.bf16.msra.mxu0 %v1336
    %1358 = vmatpush.bf16.msra.mxu0 %v1334
    %1359 = vmatpush.bf16.msra.mxu0 %v1332
    %1360 = vmatpush.bf16.msra.mxu0 %v1330
    %1361 = vmatpush.bf16.msra.mxu0 %v1328
    %1362 = vmatpush.bf16.msra.mxu0 %v1326
    %1363 = vmatpush.bf16.msra.mxu0 %v1324
    %1364 = vmatmul.bf16.gmra.mxu0 %v1253
    %v1365 = vpop.f32.mrf.mxu0
    %v1366 = vadd.f32 %v1272, %v1365
    %v1367 = vpop.f32.mrf.mxu0
    %1368 = vdwg.mxu0
    %1369 = vmatpush.bf16.msra.mxu0 %v1339
    %1370 = vmatpush.bf16.msra.mxu0 %v1337
    %1371 = vmatpush.bf16.msra.mxu0 %v1335
    %1372 = vmatpush.bf16.msra.mxu0 %v1333
    %1373 = vmatpush.bf16.msra.mxu0 %v1331
    %1374 = vmatpush.bf16.msra.mxu0 %v1329
    %1375 = vmatpush.bf16.msra.mxu0 %v1327
    %1376 = vmatpush.bf16.msra.mxu0 %v1325
    %1377 = vmatmul.bf16.gmra.mxu0 %v1253
    %v1378 = vpop.f32.mrf.mxu0
    %v1379 = vadd.f32 %v1273, %v1378
    %v1380 = vpop.f32.mrf.mxu0
    %1381 = vdwg.mxu0
    %1382 = vst [vmem:[#allocation11] sm:$0xff] %v1366
    %1383 = vst [vmem:[#allocation11 + $0x8] sm:$0xff] %v1379
    // Predicated region
    $region58: #{decoder_forward.1} parent=1 // pred_check
      _
    $region59: #{decoder_forward.1} parent=1 // pred_check_branch
      %1385 = sbr.rel (0) target = $region61
    $region60: #{decoder_forward.1} parent=1 // pred_region
      %1387 = vsyncadd [#allocation4], 0
      %s1389 = sshll.u32 [#allocation11], 4
      %s1390 = int_to_ptr.vmem [resolvable:$true] %s1389
      %s1391 = sshll.u32 %s9, 4
      %s1392 = int_to_ptr.hbm [resolvable:$true] %s1391
      %1394 = dma.vmem_to_hbm [thread:$0]  %s1390, 256, %s1392, [#allocation4]
    $region61: #{decoder_forward.1} parent=1 // pred_fallthru
      _
    // Predicated region
    $region62: #{decoder_forward.1} parent=1 // pred_check
      _
    $region63: #{decoder_forward.1} parent=1 // pred_check_branch
      %1396 = sbr.rel (0) target = $region65
    $region64: #{decoder_forward.1} parent=1 // pred_region
      %1398 = vsyncadd [#allocation13], 0
      %s1399 = sshll.u32 [#allocation12], 4
      %s1400 = int_to_ptr.vmem [resolvable:$true] %s1399
      %s1401 = sshll.u32 %s10, 4
      %s1402 = int_to_ptr.hbm [resolvable:$true] %s1401
      %1407 = dma.vmem_to_hbm [thread:$0]  %s1400, 256, %s1402, [#allocation13], 128, 128, 8
    $region65: #{decoder_forward.1} parent=1 // pred_fallthru
      _
    // Predicated region
    $region66: #{decoder_forward.1} parent=1 // pred_check
      _
    $region67: #{decoder_forward.1} parent=1 // pred_check_branch
      %1409 = sbr.rel (0) target = $region69
    $region68: #{decoder_forward.1} parent=1 // pred_region
      %1411 = vsyncadd [#allocation13], 0
      %s1412 = sshll.u32 [#allocation14], 4
      %s1413 = int_to_ptr.vmem [resolvable:$true] %s1412
      %s1414 = sshll.u32 %s11, 4
      %s1415 = int_to_ptr.hbm [resolvable:$true] %s1414
      %1420 = dma.vmem_to_hbm [thread:$0]  %s1413, 256, %s1415, [#allocation13], 128, 128, 8
    $region69: #{decoder_forward.1} parent=1 // pred_fallthru
      _
    // Predicated region
    $region70: #{decoder_forward.1} parent=1 // pred_check
      _
    $region71: #{decoder_forward.1} parent=1 // pred_check_branch
      %1422 = sbr.rel (0) target = $region73
    $region72: #{decoder_forward.1} parent=1 // pred_region
      %1424 = dma.done [#allocation4], 256
    $region73: #{decoder_forward.1} parent=1 // pred_fallthru
      _
    // Predicated region
    $region74: #{decoder_forward.1} parent=1 // pred_check
      _
    $region75: #{decoder_forward.1} parent=1 // pred_check_branch
      %1426 = sbr.rel (0) target = $region77
    $region76: #{decoder_forward.1} parent=1 // pred_region
      %1428 = dma.done [#allocation13], 256
    $region77: #{decoder_forward.1} parent=1 // pred_fallthru
      _
    // Predicated region
    $region78: #{decoder_forward.1} parent=1 // pred_check
      _
    $region79: #{decoder_forward.1} parent=1 // pred_check_branch
      %1430 = sbr.rel (0) target = $region81
    $region80: #{decoder_forward.1} parent=1 // pred_region
      %1432 = dma.done [#allocation13], 256
    $region81: #{decoder_forward.1} parent=1 // pred_fallthru
      _
    %1433 = vsyncpa [#allocation3], 1
    %1434 = vsyncpa [#allocation6], 1
    %1435 = vsyncpa [#allocation9], 1
    %1436 = vsyncpa [#allocation4], 1
    %1437 = vsyncpa [#allocation13], 1

</llo_original>
